<compile_context>
chip_gen: v5e
topology: v5e:2x2
jax: 0.10.0
libtpu: 0.0.40
codegen_flags: <defaults>
</compile_context>

<pallas_src>
import jax
import jax.numpy as jnp
import numpy as np
from jax.experimental import pallas as pl
from jax.experimental.pallas import tpu as pltpu

LANE = 128
SUBLANE = 8


def _round_up(v, m):
    return ((v + m - 1) // m) * m


def _pad2(a, rows, cols, dtype):
    out = jnp.zeros((rows, cols), dtype)
    return out.at[: a.shape[0], : a.shape[1]].set(a.astype(dtype))


# ---------------------------------------------------------------------------
# Kernel 1: block-sparse GCN propagation relu(A_norm @ XW + bg), fused with the
# per-graph mean pool.  Each node-row tile emits one pooled partial [G_pad, H_pad].
# ---------------------------------------------------------------------------
def gcn_pool_kernel(ptr_ref, col_ref, cnt_ref,        # SMEM (scalar-prefetched tables)
                    a_ref, xw_ref, p_ref, bg_ref,      # VMEM inputs
                    part_ref,                          # VMEM output [1, G_pad, H_pad]
                    acc_h):                            # VMEM scratch [tm, H_pad] f32
    i = pl.program_id(0)          # node-row tile
    k = pl.program_id(1)          # nonzero-block slot within this row
    kb = pl.num_programs(1)

    @pl.when(k == 0)
    def _():
        acc_h[...] = jnp.zeros_like(acc_h)

    # Only real (non-padded) block slots contribute; padded slots are clamped by the
    # prefetched tables to a valid block (harmless repeat DMA) and their compute skipped.
    @pl.when(k < cnt_ref[i])
    def _():
        acc_h[...] += jnp.dot(a_ref[0], xw_ref[...],
                              preferred_element_type=jnp.float32)

    @pl.when(k == kb - 1)
    def _():
        h = jnp.maximum(acc_h[...] + bg_ref[...], 0.0)        # GCN bias + ReLU in f32
        part_ref[0] = jnp.dot(p_ref[...], h.astype(jnp.bfloat16),
                              preferred_element_type=jnp.float32)


# ---------------------------------------------------------------------------
# Kernel 2: tiny classifier MLP on the pooled per-graph features (single block).
# ---------------------------------------------------------------------------
def classifier_kernel(g_ref, w1_ref, b1_ref, w2_ref, b2_ref, wc_ref, bc_ref, out_ref):
    h1 = jnp.maximum(
        jnp.dot(g_ref[...].astype(jnp.bfloat16), w1_ref[...],
                preferred_element_type=jnp.float32) + b1_ref[...], 0.0)
    h2 = jnp.maximum(
        jnp.dot(h1.astype(jnp.bfloat16), w2_ref[...],
                preferred_element_type=jnp.float32) + b2_ref[...], 0.0)
    out_ref[...] = (jnp.dot(h2.astype(jnp.bfloat16), wc_ref[...],
                            preferred_element_type=jnp.float32) + bc_ref[...])


def deepwukong_forward(x, a_norm, pool, params, *, tm=512, tk=512):
    N, D = x.shape
    G = pool.shape[0]
    H = params["wg"].shape[1]
    Hc = params["w1"].shape[1]
    C = params["wc"].shape[1]

    blk = int(np.lcm(tm, tk))
    N_pad = _round_up(N, blk)
    H_pad = _round_up(H, LANE)
    Hc_pad = _round_up(Hc, LANE)
    C_pad = _round_up(C, LANE)
    G_pad = _round_up(G, SUBLANE)
    ni, nk = N_pad // tm, N_pad // tk

    # ---- host-side block-sparsity analysis (shapes must be static) ----
    a_np = np.zeros((N_pad, N_pad), np.float32)
    a_np[:N, :N] = np.asarray(a_norm, np.float32)
    blocks = a_np.reshape(ni, tm, nk, tk).transpose(0, 2, 1, 3)    # [ni, nk, tm, tk]
    nz = blocks.reshape(ni, nk, -1).any(axis=-1)                   # [ni, nk]
    counts = nz.sum(axis=-1).astype(np.int32)                      # [ni] nonzero blocks/row
    kb = max(int(counts.max()), 1)
    nnz = max(int(nz.sum()), 1)

    blk_ptr = np.zeros((ni * kb,), np.int32)   # flat slot -> compacted block storage index
    blk_col = np.zeros((ni * kb,), np.int32)   # flat slot -> node-column tile index
    a_blocks_np = np.zeros((nnz, tm, tk), np.float32)
    base = 0
    for i in range(ni):
        cols_i = np.nonzero(nz[i])[0]
        for j, c in enumerate(cols_i):
            a_blocks_np[base + j] = blocks[i, c]
        for k in range(kb):
            if len(cols_i):
                kk = min(k, len(cols_i) - 1)     # clamp padded slots to last valid block
                blk_ptr[i * kb + k] = base + kk
                blk_col[i * kb + k] = int(cols_i[kk])
        base += len(cols_i)

    a_blocks = jnp.asarray(a_blocks_np, jnp.bfloat16)   # compacted nonzero A blocks in HBM

    # Hoisted X @ Wg (done once in XLA with the unpadded contraction dim).
    xw = jnp.dot(x.astype(jnp.float32), params["wg"].astype(jnp.float32),
                 preferred_element_type=jnp.float32)     # [N, H]
    xw_pad = _pad2(xw, N_pad, H_pad, jnp.bfloat16)
    p_pad = _pad2(pool, G_pad, N_pad, jnp.bfloat16)      # zero-padded -> cancels pad rows
    bg = _pad2(params["bg"], 1, H_pad, jnp.float32)

    flops = 2 * nnz * tm * tk * H_pad + 2 * ni * G_pad * tm * H_pad
    bytes_accessed = int(a_blocks.size * 2 + ni * kb * tk * H_pad * 2
                         + p_pad.size * 2 + ni * G_pad * H_pad * 4)

    partial = pl.pallas_call(
        gcn_pool_kernel,
        out_shape=jax.ShapeDtypeStruct((ni, G_pad, H_pad), jnp.float32),
        grid_spec=pltpu.PrefetchScalarGridSpec(
            num_scalar_prefetch=3,
            grid=(ni, kb),
            in_specs=[
                # compacted A block for slot (i, k)
                pl.BlockSpec((1, tm, tk),
                             lambda i, k, ptr_s, col_s, cnt_s: (ptr_s[i * kb + k], 0, 0)),
                # XW rows for that block's column tile
                pl.BlockSpec((tk, H_pad),
                             lambda i, k, ptr_s, col_s, cnt_s: (col_s[i * kb + k], 0)),
                # pooling columns for row tile i
                pl.BlockSpec((G_pad, tm),
                             lambda i, k, ptr_s, col_s, cnt_s: (0, i)),
                # GCN bias
                pl.BlockSpec((1, H_pad),
                             lambda i, k, ptr_s, col_s, cnt_s: (0, 0)),
            ],
            out_specs=pl.BlockSpec((1, G_pad, H_pad),
                                   lambda i, k, ptr_s, col_s, cnt_s: (i, 0, 0)),
            scratch_shapes=[pltpu.VMEM((tm, H_pad), jnp.float32)],
        ),
        compiler_params=pltpu.CompilerParams(
            # row tiles are independent (own output block) -> megacore-safe on v7x;
            # the nonzero-block slot axis carries acc_h -> sequential.
            dimension_semantics=("parallel", "arbitrary"),
            vmem_limit_bytes=32 * 1024 * 1024),
        cost_estimate=pl.CostEstimate(flops=int(flops), transcendentals=0,
                                      bytes_accessed=bytes_accessed),
    )(jnp.asarray(blk_ptr), jnp.asarray(blk_col), jnp.asarray(counts),
      a_blocks, xw_pad, p_pad, bg)

    g_pad = jnp.sum(partial, axis=0)         # tiny cross-row-tile reduce [G_pad, H_pad]

    # ---- classifier MLP: single-block second pallas_call ----
    w1 = _pad2(params["w1"], H_pad, Hc_pad, jnp.bfloat16)
    b1 = _pad2(params["b1"], 1, Hc_pad, jnp.float32)
    w2 = _pad2(params["w2"], Hc_pad, Hc_pad, jnp.bfloat16)
    b2 = _pad2(params["b2"], 1, Hc_pad, jnp.float32)
    wc = _pad2(params["wc"], Hc_pad, C_pad, jnp.bfloat16)
    bc = _pad2(params["bc"], 1, C_pad, jnp.float32)

    out = pl.pallas_call(
        classifier_kernel,
        out_shape=jax.ShapeDtypeStruct((G_pad, C_pad), jnp.float32),
        grid_spec=pltpu.PrefetchScalarGridSpec(
            num_scalar_prefetch=0,
            grid=(1,),
            in_specs=[
                pl.BlockSpec((G_pad, H_pad), lambda i: (0, 0)),
                pl.BlockSpec((H_pad, Hc_pad), lambda i: (0, 0)),
                pl.BlockSpec((1, Hc_pad), lambda i: (0, 0)),
                pl.BlockSpec((Hc_pad, Hc_pad), lambda i: (0, 0)),
                pl.BlockSpec((1, Hc_pad), lambda i: (0, 0)),
                pl.BlockSpec((Hc_pad, C_pad), lambda i: (0, 0)),
                pl.BlockSpec((1, C_pad), lambda i: (0, 0)),
            ],
            out_specs=pl.BlockSpec((G_pad, C_pad), lambda i: (0, 0)),
        ),
        compiler_params=pltpu.CompilerParams(
            dimension_semantics=("arbitrary",),
            vmem_limit_bytes=4 * 1024 * 1024),
    )(g_pad, w1, b1, w2, b2, wc, bc)

    return out[:G, :C]


def reference_forward(x, a_norm, pool, params):
    h = jnp.maximum(a_norm @ (x @ params["wg"]) + params["bg"], 0.0)
    g = pool @ h
    h1 = jnp.maximum(g @ params["w1"] + params["b1"], 0.0)
    h2 = jnp.maximum(h1 @ params["w2"] + params["b2"], 0.0)
    return h2 @ params["wc"] + params["bc"]


if __name__ == "__main__":
    # --- small config consistent with the module ---
    vocab_size = 50          # Vocabulary.build_from_w2v(...)
    pad_idx = 0
    seq_len = 8              # tokens per statement (XFG node)
    emb_dim = 32             # ST-encoder / rnn hidden size (input to GCN)
    gnn_hidden = 32          # config['gnn']['hidden_size']
    cls_hidden = 32          # config['classifier']['hidden_size']
    n_classes = 2            # config['classifier']['n_classes']
    n_nodes = 256            # total XFG nodes in the batch
    n_graphs = 2             # n_method (graphs in the Batch)

    key = jax.random.PRNGKey(0)
    keys = jax.random.split(key, 10)

    def glorot(k, shape):
        fan_in, fan_out = shape
        lim = jnp.sqrt(6.0 / (fan_in + fan_out))
        return jax.random.uniform(k, shape, jnp.float32, -lim, lim)

    params = {
        "wg": glorot(keys[0], (emb_dim, gnn_hidden)),
        "bg": jnp.zeros((1, gnn_hidden), jnp.float32),
        "w1": glorot(keys[1], (gnn_hidden, cls_hidden)),
        "b1": 0.01 * jnp.ones((1, cls_hidden), jnp.float32),
        "w2": glorot(keys[2], (cls_hidden, cls_hidden)),
        "b2": 0.01 * jnp.ones((1, cls_hidden), jnp.float32),
        "wc": glorot(keys[3], (cls_hidden, n_classes)),
        "bc": jnp.zeros((1, n_classes), jnp.float32),
    }
    emb_table = 0.1 * jax.random.normal(keys[4], (vocab_size, emb_dim), jnp.float32)
    emb_table = emb_table.at[pad_idx].set(0.0)

    # --- synthetic Batch: token ids per node, chain edges within each graph ---
    token_ids = jax.random.randint(keys[5], (n_nodes, seq_len), 0, vocab_size)
    token_ids = token_ids.at[:, -2:].set(pad_idx)           # some padding
    mask = (token_ids != pad_idx).astype(jnp.float32)       # [N, S]
    tok_emb = emb_table[token_ids]                          # [N, S, D] (glue: gather)
    denom = jnp.maximum(mask.sum(-1, keepdims=True), 1.0)
    x = (tok_emb * mask[..., None]).sum(1) / denom          # [N, D] masked mean

    # graph membership: first half of nodes -> graph 0, second half -> graph 1
    batch_vec = np.repeat(np.arange(n_graphs), n_nodes // n_graphs)

    # adjacency: chain edges inside each graph, plus self loops, sym-normalized
    A = np.zeros((n_nodes, n_nodes), np.float32)
    for i in range(n_nodes - 1):
        if batch_vec[i] == batch_vec[i + 1]:
            A[i, i + 1] = 1.0
            A[i + 1, i] = 1.0
    A += np.eye(n_nodes, dtype=np.float32)
    deg = A.sum(-1)
    d_inv_sqrt = 1.0 / np.sqrt(deg)
    a_norm = jnp.asarray(d_inv_sqrt[:, None] * A * d_inv_sqrt[None, :])

    # per-graph mean pooling matrix [G, N]
    P = np.zeros((n_graphs, n_nodes), np.float32)
    for n in range(n_nodes):
        P[batch_vec[n], n] = 1.0
    P = P / P.sum(-1, keepdims=True)
    pool = jnp.asarray(P)

    # --- run kernel: small tiles exercise the block-sparse machinery
    #     (2 row tiles, 2 off-diagonal zero blocks skipped); defaults (512) exercise
    #     the MXU-sized single-block path.
    out_small = jax.block_until_ready(
        deepwukong_forward(x, a_norm, pool, params, tm=128, tk=128))
    out_big = jax.block_until_ready(deepwukong_forward(x, a_norm, pool, params))

    ref = reference_forward(x, a_norm, pool, params)
    assert out_small.shape == (n_graphs, n_classes)
    assert out_big.shape == (n_graphs, n_classes)
    # bf16 matmul inputs with f32 accumulation -> loose-ish tolerance vs f32 reference
    np.testing.assert_allclose(np.asarray(out_small), np.asarray(ref),
                               rtol=5e-2, atol=5e-3)
    np.testing.assert_allclose(np.asarray(out_big), np.asarray(ref),
                               rtol=5e-2, atol=5e-3)

    print("KERNEL_OK")
</pallas_src>

<mosaic_0001>
module attributes {stable_mosaic.version = 11 : i64} {
  func.func @gcn_pool_kernel(%arg0: i32, %arg1: i32, %arg2: memref<2xi32, #tpu.memory_space<smem>>, %arg3: memref<2xi32, #tpu.memory_space<smem>>, %arg4: memref<2xi32, #tpu.memory_space<smem>>, %arg5: memref<1x128x128xbf16, #tpu.memory_space<vmem>>, %arg6: memref<128x128xbf16, #tpu.memory_space<vmem>>, %arg7: memref<8x128xbf16, #tpu.memory_space<vmem>>, %arg8: memref<1x128xf32, #tpu.memory_space<vmem>>, %arg9: memref<1x8x128xf32, #tpu.memory_space<vmem>>, %arg10: memref<128x128xf32, #tpu.memory_space<vmem>>) attributes {dimension_semantics = [#tpu.dimension_semantics<parallel>, #tpu.dimension_semantics<arbitrary>], iteration_bounds = array<i64: 2, 1>, scalar_prefetch = 3 : i64, scratch_operands = 1 : i64, tpu.core_type = #tpu.core_type<tc>, window_params = [{transform_indices = @transform_0, window_bounds = array<i64: 1, 128, 128>}, {transform_indices = @transform_1, window_bounds = array<i64: 128, 128>}, {transform_indices = @transform_2, window_bounds = array<i64: 8, 128>}, {pipeline_mode = #tpu.pipeline_mode<synchronous>, transform_indices = @transform_3, window_bounds = array<i64: 1, 128>}, {transform_indices = @transform_4, window_bounds = array<i64: 1, 8, 128>}]} {
    %c0_i32 = arith.constant 0 : i32
    %0 = arith.cmpi eq, %arg1, %c0_i32 : i32
    %1 = arith.extui %0 : i1 to i32
    %c0_i32_0 = arith.constant 0 : i32
    %2 = arith.cmpi ne, %1, %c0_i32_0 : i32
    scf.if %2 {
      %cst = arith.constant 0.000000e+00 : f32
      %11 = vector.broadcast %cst : f32 to vector<128x128xf32>
      %c0 = arith.constant 0 : index
      %c0_4 = arith.constant 0 : index
      %12 = vector.load %arg10[%c0, %c0_4] : memref<128x128xf32, #tpu.memory_space<vmem>>, vector<128x128xf32>
      tpu.vector_store %arg10[%c0, %c0_4], %11 {strides = array<i32>} : memref<128x128xf32, #tpu.memory_space<vmem>>, vector<128x128xf32>,
    } else {
    }
    %3 = arith.index_cast %arg0 : i32 to index
    %4 = memref.load %arg4[%3] : memref<2xi32, #tpu.memory_space<smem>>
    %5 = arith.cmpi slt, %arg1, %4 : i32
    %6 = arith.extui %5 : i1 to i32
    %c0_i32_1 = arith.constant 0 : i32
    %7 = arith.cmpi ne, %6, %c0_i32_1 : i32
    scf.if %7 {
      %c0 = arith.constant 0 : index
      %c0_4 = arith.constant 0 : index
      %11 = vector.load %arg10[%c0, %c0_4] : memref<128x128xf32, #tpu.memory_space<vmem>>, vector<128x128xf32>
      %c0_5 = arith.constant 0 : index
      %c0_6 = arith.constant 0 : index
      %c0_7 = arith.constant 0 : index
      %12 = vector.load %arg5[%c0_5, %c0_6, %c0_7] : memref<1x128x128xbf16, #tpu.memory_space<vmem>>, vector<1x128x128xbf16>
      %13 = vector.shape_cast %12 : vector<1x128x128xbf16> to vector<128x128xbf16>
      %c0_8 = arith.constant 0 : index
      %c0_9 = arith.constant 0 : index
      %14 = vector.load %arg6[%c0_8, %c0_9] : memref<128x128xbf16, #tpu.memory_space<vmem>>, vector<128x128xbf16>
      %cst = arith.constant dense<0.000000e+00> : vector<128x128xf32>
      %15 = tpu.matmul %13, %14, %cst {dimension_numbers = #tpu.dot_dimension_numbers<[1], [0], [0], [1], [0, 0, 1, 1], [], []>} : vector<128x128xbf16>, vector<128x128xbf16>, vector<128x128xf32> -> vector<128x128xf32>
      %16 = arith.addf %11, %15 : vector<128x128xf32>
      %c0_10 = arith.constant 0 : index
      %c0_11 = arith.constant 0 : index
      %17 = vector.load %arg10[%c0_10, %c0_11] : memref<128x128xf32, #tpu.memory_space<vmem>>, vector<128x128xf32>
      tpu.vector_store %arg10[%c0_10, %c0_11], %16 {strides = array<i32>} : memref<128x128xf32, #tpu.memory_space<vmem>>, vector<128x128xf32>,
    } else {
    }
    %c0_i32_2 = arith.constant 0 : i32
    %8 = arith.cmpi eq, %arg1, %c0_i32_2 : i32
    %9 = arith.extui %8 : i1 to i32
    %c0_i32_3 = arith.constant 0 : i32
    %10 = arith.cmpi ne, %9, %c0_i32_3 : i32
    scf.if %10 {
      %c0 = arith.constant 0 : index
      %c0_4 = arith.constant 0 : index
      %11 = vector.load %arg10[%c0, %c0_4] : memref<128x128xf32, #tpu.memory_space<vmem>>, vector<128x128xf32>
      %c0_5 = arith.constant 0 : index
      %c0_6 = arith.constant 0 : index
      %12 = vector.load %arg8[%c0_5, %c0_6] : memref<1x128xf32, #tpu.memory_space<vmem>>, vector<1x128xf32>
      %13 = vector.broadcast %12 : vector<1x128xf32> to vector<128x128xf32>
      %14 = arith.addf %11, %13 : vector<128x128xf32>
      %cst = arith.constant 0.000000e+00 : f32
      %15 = vector.broadcast %cst : f32 to vector<128x128xf32>
      %16 = arith.maximumf %14, %15 : vector<128x128xf32>
      %c0_7 = arith.constant 0 : index
      %c0_8 = arith.constant 0 : index
      %17 = vector.load %arg7[%c0_7, %c0_8] : memref<8x128xbf16, #tpu.memory_space<vmem>>, vector<8x128xbf16>
      %18 = arith.truncf %16 : vector<128x128xf32> to vector<128x128xbf16>
      %cst_9 = arith.constant dense<0.000000e+00> : vector<8x128xf32>
      %19 = tpu.matmul %17, %18, %cst_9 {dimension_numbers = #tpu.dot_dimension_numbers<[1], [0], [0], [1], [0, 0, 1, 1], [], []>} : vector<8x128xbf16>, vector<128x128xbf16>, vector<8x128xf32> -> vector<8x128xf32>
      %c0_10 = arith.constant 0 : index
      %c0_11 = arith.constant 0 : index
      %c0_12 = arith.constant 0 : index
      %20 = vector.load %arg9[%c0_10, %c0_11, %c0_12] : memref<1x8x128xf32, #tpu.memory_space<vmem>>, vector<1x8x128xf32>
      %21 = vector.shape_cast %20 : vector<1x8x128xf32> to vector<8x128xf32>
      %22 = vector.shape_cast %19 : vector<8x128xf32> to vector<1x8x128xf32>
      tpu.vector_store %arg9[%c0_10, %c0_11, %c0_12], %22 {strides = array<i32>} : memref<1x8x128xf32, #tpu.memory_space<vmem>>, vector<1x8x128xf32>,
    } else {
    }
    return
  }
  func.func @transform_0(%arg0: i32, %arg1: i32, %arg2: memref<2xi32, #tpu.memory_space<smem>>, %arg3: memref<2xi32, #tpu.memory_space<smem>>, %arg4: memref<2xi32, #tpu.memory_space<smem>>) -> (i32, i32, i32) {
    %c1_i32 = arith.constant 1 : i32
    %0 = arith.muli %arg0, %c1_i32 : i32
    %1 = arith.addi %0, %arg1 : i32
    %2 = arith.index_cast %1 : i32 to index
    %3 = memref.load %arg2[%2] : memref<2xi32, #tpu.memory_space<smem>>
    %c0_i32 = arith.constant 0 : i32
    %c0_i32_0 = arith.constant 0 : i32
    %c0_i32_1 = arith.constant 0 : i32
    return %3, %c0_i32, %c0_i32_0 : i32, i32, i32
  }
  func.func @transform_1(%arg0: i32, %arg1: i32, %arg2: memref<2xi32, #tpu.memory_space<smem>>, %arg3: memref<2xi32, #tpu.memory_space<smem>>, %arg4: memref<2xi32, #tpu.memory_space<smem>>) -> (i32, i32) {
    %c1_i32 = arith.constant 1 : i32
    %0 = arith.muli %arg0, %c1_i32 : i32
    %1 = arith.addi %0, %arg1 : i32
    %2 = arith.index_cast %1 : i32 to index
    %3 = memref.load %arg3[%2] : memref<2xi32, #tpu.memory_space<smem>>
    %c0_i32 = arith.constant 0 : i32
    %c0_i32_0 = arith.constant 0 : i32
    return %3, %c0_i32 : i32, i32
  }
  func.func @transform_2(%arg0: i32, %arg1: i32, %arg2: memref<2xi32, #tpu.memory_space<smem>>, %arg3: memref<2xi32, #tpu.memory_space<smem>>, %arg4: memref<2xi32, #tpu.memory_space<smem>>) -> (i32, i32) {
    %c0_i32 = arith.constant 0 : i32
    %c0_i32_0 = arith.constant 0 : i32
    return %c0_i32, %arg0 : i32, i32
  }
  func.func @transform_3(%arg0: i32, %arg1: i32, %arg2: memref<2xi32, #tpu.memory_space<smem>>, %arg3: memref<2xi32, #tpu.memory_space<smem>>, %arg4: memref<2xi32, #tpu.memory_space<smem>>) -> (i32, i32) {
    %c0_i32 = arith.constant 0 : i32
    %c0_i32_0 = arith.constant 0 : i32
    %c0_i32_1 = arith.constant 0 : i32
    return %c0_i32, %c0_i32_0 : i32, i32
  }
  func.func @transform_4(%arg0: i32, %arg1: i32, %arg2: memref<2xi32, #tpu.memory_space<smem>>, %arg3: memref<2xi32, #tpu.memory_space<smem>>, %arg4: memref<2xi32, #tpu.memory_space<smem>>) -> (i32, i32, i32) {
    %c0_i32 = arith.constant 0 : i32
    %c0_i32_0 = arith.constant 0 : i32
    %c0_i32_1 = arith.constant 0 : i32
    return %arg0, %c0_i32, %c0_i32_0 : i32, i32, i32
  }
}

</mosaic_0001>

<llo_original>
// kernel: tpu_custom_call.1
$region0: #{tpu_custom_call.1}
  #allocation0 [shape = 'u32[]', space=smem, size = 0x4, offset = 0x4, fixed_abs, tag = 'smem constant byte address 0x4 - core index']
  #allocation1 [shape = 'u32[72,128]{1,0:T(1,128)}', space=vmem, size = 0x9000, scoped, tag = 'internal scratch']
  #allocation2 [shape = 'f32[128,128]{1,0:T(8,128)}', space=vmem, size = 0x10000, scoped, tag = 'scratch operand']
  #allocation3 [shape = 's32[1]{0}', space=sflag, size = 0x4, scoped, tag = 'scoped memory for tpu_custom_call.1']
  #allocation4 [shape = 'u8[512]{0}', space=smem, size = 0x200, scoped, tag = 'prefetched SMEM operand 0']
  #allocation5 [shape = 'u8[512]{0}', space=smem, size = 0x200, scoped, tag = 'prefetched SMEM operand 1']
  #allocation6 [shape = 'u8[512]{0}', space=smem, size = 0x200, scoped, tag = 'prefetched SMEM operand 2']
  %s0 = inlined_call_operand.hbm [shape: s32[2], index: 0, kind: input, shape index: {}]
  %s1 = inlined_call_operand.hbm [shape: s32[2], index: 1, kind: input, shape index: {}]
  %s2 = inlined_call_operand.vmem [shape: s32[2], index: 2, kind: input, shape index: {}]
  %s3 = inlined_call_operand.hbm [shape: bf16[2,128,128], index: 3, kind: input, shape index: {}]
  %s4 = inlined_call_operand.hbm [shape: bf16[256,128], index: 4, kind: input, shape index: {}]
  %s5 = inlined_call_operand.hbm [shape: bf16[8,256], index: 5, kind: input, shape index: {}]
  %s6 = inlined_call_operand.vmem [shape: f32[1,128], index: 6, kind: input, shape index: {}]
  %s7 = inlined_call_operand.hbm [shape: f32[2,8,128], index: 7, kind: output, shape index: {}]
  %s8 = sld [smem:[#allocation0]]
  $region73: #{tpu_custom_call.1} parent=0
    _
  %s10 = ssub.s32 1, %s8
  %s11 = scalar_select 0, %s10, %s8
  %s13 = sshll.u32 %s0, 4
  %s14 = int_to_ptr.hbm [resolvable:$true] %s13
  %16 = dma.hbm_to_smem %s14, 16, [#allocation4], [#allocation3]
  %s18 = sshll.u32 %s1, 4
  %s19 = int_to_ptr.hbm [resolvable:$true] %s18
  %21 = dma.hbm_to_smem %s19, 16, [#allocation5], [#allocation3]
  %s23 = sshll.u32 %s2, 4
  %s24 = int_to_ptr.vmem [resolvable:$true] %s23
  %26 = dma.vmem_to_smem %s24, 16, [#allocation6], [#allocation3]
  %28 = dma.done [#allocation3], 48
  %29 = sfence
  $region1: #{tpu_custom_call.1} parent=0
    #allocation7 [shape = 'u8[65536]{0}', space=vmem, size = 0x10000, scoped, tag = 'input window, operand 3']
    #allocation8 [shape = 's32[2]{0}', space=sflag, size = 0x8, scoped, tag = 'scoped memory for tpu_custom_call.1']
    #allocation9 [shape = 's32[2]{0}', space=sflag, size = 0x8, scoped, tag = 'scoped memory for tpu_custom_call.1']
    #allocation10 [shape = 'u8[65536]{0}', space=vmem, size = 0x10000, scoped, tag = 'input window, operand 4']
    #allocation11 [shape = 's32[2]{0}', space=sflag, size = 0x8, scoped, tag = 'scoped memory for tpu_custom_call.1']
    #allocation12 [shape = 'u8[4096]{0}', space=vmem, size = 0x1000, scoped, tag = 'input window, operand 5']
    #allocation13 [shape = 'u8[8192]{0}', space=vmem, size = 0x2000, scoped, tag = 'output window, operand 0']
    %30 = vsyncpa [#allocation8], 0
    %s31 = scalar_lea.sflag [#allocation8], 1
    %32 = vsyncpa %s31, 0
    %33 = vsyncpa [#allocation11], 0
    %s34 = scalar_lea.sflag [#allocation11], 1
    %35 = vsyncpa %s34, 0
    %36 = vsyncpa [#allocation9], 0
    %s37 = scalar_lea.sflag [#allocation9], 1
    %38 = vsyncpa %s37, 0
    loop: start=0, step=1, limit=4
    $region2: #{tpu_custom_call.1} parent=1 // loop_pre_header
      _
    $region3: #{tpu_custom_call.1} parent=1 // loop_header
      %s40 = sphi 0, %s44
      %p41 = scmp.ge.s32.totalorder %s40, 4
      %s47 = sphi 0, %s59
      %s48 = sphi 0, %s55
      %s49 = sphi 0, %s47
      %s50 = sphi 0, %s48
      %s51 = sphi 0, %s49
      %s52 = sphi 0, %s50
      %s66 = sphi 0, %s68
      %s69 = sphi 0, %s66
      %s70 = sphi 0, %s69
      %s86 = sphi 0, %s70
      %s96 = sphi 0, %s98
      %s99 = sphi 0, %s96
      %s100 = sphi 0, %s99
      %s116 = sphi 0, %s100
      %s122 = sphi 0, %s124
      %s125 = sphi 0, %s122
      %s126 = sphi 0, %s125
      %s142 = sphi 0, %s126
      %s146 = sphi 0, %s146
      %s148 = sphi 0, %s146
      %s149 = sphi 0, %s148
      %s163 = sphi 0, %s149
      %s169 = sphi 0, %s171
      %s172 = sphi 0, %s169
      %s173 = sphi 0, %s172
      %s189 = sphi 0, %s173
    $region4: #{tpu_custom_call.1} parent=1 // loop_header_branch
      %43 = sbr.rel (%p41) target = $region8
    $region5: #{tpu_custom_call.1} parent=1 // loop_body
      %s45 = ssub.s32 %s40, 1
      %s46 = ssub.s32 %s40, 2
      %s53 = sadd.s32 1, %s48
      %p54 = scmp.ge.s32.totalorder %s53, 1
      %s55 = scalar_select %p54, 0, %s53
      %s56 = sadd.s32 1, %s47
      %s57 = scalar_select %p54, %s56, %s47
      %p58 = scmp.ge.s32.totalorder %s57, 2
      %s59 = scalar_select %p58, 0, %s57
      %s60 = sadd.s32 %s47, %s48
      %s61 = sld [smem:[#allocation4 + %s60]]
      %s62 = sadd.s32 %s59, %s55
      %s63 = sld [smem:[#allocation4 + %s62]]
      %s64 = ssub.s32 %s61, %s63
      %p65 = scmp.eq.s32.totalorder %s64, 0
      %s67 = sadd.s32 %s66, 1
      %s68 = scalar_select %p65, %s66, %s67
      %p71 = pneg %p65
      %p72 = scmp.eq.s32.totalorder %s40, 1
      %p73 = por %p71, %p72
      %p74 = scmp.ne.s32.totalorder %s66, %s69
      %p75 = scmp.eq.s32.totalorder %s40, 0
      %p76 = por %p74, %p75
      %p77 = scmp.ne.s32.totalorder %s66, %s69
      %p78 = scmp.eq.s32.totalorder %s45, 1
      %p79 = por %p77, %p78
      %p80 = scmp.ne.s32.totalorder %s69, %s70
      %p81 = scmp.eq.s32.totalorder %s45, 0
      %p82 = por %p80, %p81
      %p83 = scmp.ne.s32.totalorder %s69, %s70
      %p84 = scmp.eq.s32.totalorder %s46, 1
      %p85 = por %p83, %p84
      %p87 = scmp.ne.s32.totalorder %s70, %s86
      %p88 = scmp.eq.s32.totalorder %s46, 0
      %p89 = por %p87, %p88
      %s90 = sadd.s32 %s47, %s48
      %s91 = sld [smem:[#allocation5 + %s90]]
      %s92 = sadd.s32 %s59, %s55
      %s93 = sld [smem:[#allocation5 + %s92]]
      %s94 = ssub.s32 %s91, %s93
      %p95 = scmp.eq.s32.totalorder %s94, 0
      %s97 = sadd.s32 %s96, 1
      %s98 = scalar_select %p95, %s96, %s97
      %p101 = pneg %p95
      %p102 = scmp.eq.s32.totalorder %s40, 1
      %p103 = por %p101, %p102
      %p104 = scmp.ne.s32.totalorder %s96, %s99
      %p105 = scmp.eq.s32.totalorder %s40, 0
      %p106 = por %p104, %p105
      %p107 = scmp.ne.s32.totalorder %s96, %s99
      %p108 = scmp.eq.s32.totalorder %s45, 1
      %p109 = por %p107, %p108
      %p110 = scmp.ne.s32.totalorder %s99, %s100
      %p111 = scmp.eq.s32.totalorder %s45, 0
      %p112 = por %p110, %p111
      %p113 = scmp.ne.s32.totalorder %s99, %s100
      %p114 = scmp.eq.s32.totalorder %s46, 1
      %p115 = por %p113, %p114
      %p117 = scmp.ne.s32.totalorder %s100, %s116
      %p118 = scmp.eq.s32.totalorder %s46, 0
      %p119 = por %p117, %p118
      %s120 = ssub.s32 %s47, %s59
      %p121 = scmp.eq.s32.totalorder %s120, 0
      %s123 = sadd.s32 %s122, 1
      %s124 = scalar_select %p121, %s122, %s123
      %p127 = pneg %p121
      %p128 = scmp.eq.s32.totalorder %s40, 1
      %p129 = por %p127, %p128
      %p130 = scmp.ne.s32.totalorder %s122, %s125
      %p131 = scmp.eq.s32.totalorder %s40, 0
      %p132 = por %p130, %p131
      %p133 = scmp.ne.s32.totalorder %s122, %s125
      %p134 = scmp.eq.s32.totalorder %s45, 1
      %p135 = por %p133, %p134
      %p136 = scmp.ne.s32.totalorder %s125, %s126
      %p137 = scmp.eq.s32.totalorder %s45, 0
      %p138 = por %p136, %p137
      %p139 = scmp.ne.s32.totalorder %s125, %s126
      %p140 = scmp.eq.s32.totalorder %s46, 1
      %p141 = por %p139, %p140
      %p143 = scmp.ne.s32.totalorder %s126, %s142
      %p144 = scmp.eq.s32.totalorder %s46, 0
      %p145 = por %p143, %p144
      %s147 = sadd.s32 %s146, 1
      %p150 = scmp.eq.s32.totalorder %s40, 1
      %p151 = scmp.ne.s32.totalorder %s146, %s148
      %p152 = scmp.eq.s32.totalorder %s40, 0
      %p153 = por %p151, %p152
      %p154 = scmp.ne.s32.totalorder %s146, %s148
      %p155 = scmp.eq.s32.totalorder %s45, 1
      %p156 = por %p154, %p155
      %p157 = scmp.ne.s32.totalorder %s148, %s149
      %p158 = scmp.eq.s32.totalorder %s45, 0
      %p159 = por %p157, %p158
      %p160 = scmp.ne.s32.totalorder %s148, %s149
      %p161 = scmp.eq.s32.totalorder %s46, 1
      %p162 = por %p160, %p161
      %p164 = scmp.ne.s32.totalorder %s149, %s163
      %p165 = scmp.eq.s32.totalorder %s46, 0
      %p166 = por %p164, %p165
      %s167 = ssub.s32 %s47, %s59
      %p168 = scmp.eq.s32.totalorder %s167, 0
      %s170 = sadd.s32 %s169, 1
      %s171 = scalar_select %p168, %s169, %s170
      %p174 = pneg %p168
      %p175 = scmp.eq.s32.totalorder %s40, 1
      %p176 = por %p174, %p175
      %p177 = scmp.ne.s32.totalorder %s169, %s172
      %p178 = scmp.eq.s32.totalorder %s40, 0
      %p179 = por %p177, %p178
      %p180 = scmp.ne.s32.totalorder %s169, %s172
      %p181 = scmp.eq.s32.totalorder %s45, 1
      %p182 = por %p180, %p181
      %p183 = scmp.ne.s32.totalorder %s172, %s173
      %p184 = scmp.eq.s32.totalorder %s45, 0
      %p185 = por %p183, %p184
      %p186 = scmp.ne.s32.totalorder %s172, %s173
      %p187 = scmp.eq.s32.totalorder %s46, 1
      %p188 = por %p186, %p187
      %p190 = scmp.ne.s32.totalorder %s173, %s189
      %p191 = scmp.eq.s32.totalorder %s46, 0
      %p192 = por %p190, %p191
      %p193 = scmp.le.s32.totalorder 1, %s40
      %p194 = scmp.lt.s32.totalorder %s40, 3
      %p195 = pnand %p193, %p194
      %p196 = pneg %p195
      // Predicated region
      $region9: #{tpu_custom_call.1} parent=5 // pred_check
        _
      $region10: #{tpu_custom_call.1} parent=5 // pred_check_branch
        %198 = sbr.rel (%p195) target = $region12
      $region11: #{tpu_custom_call.1} parent=5 // pred_region
        %s199 = ssub.s32 %s40, 1
        // Predicated region
        $region13: #{tpu_custom_call.1} parent=11 // pred_check
          %p200 = pneg %p159
        $region14: #{tpu_custom_call.1} parent=11 // pred_check_branch
          %202 = sbr.rel (%p200) target = $region16
        $region15: #{tpu_custom_call.1} parent=11 // pred_region
          _
        $region16: #{tpu_custom_call.1} parent=11 // pred_fallthru
          _
      $region12: #{tpu_custom_call.1} parent=5 // pred_fallthru
        _
      %p203 = scmp.lt.s32.totalorder %s40, 2
      // Predicated region
      $region17: #{tpu_custom_call.1} parent=5 // pred_check
        %p204 = pneg %p203
      $region18: #{tpu_custom_call.1} parent=5 // pred_check_branch
        %206 = sbr.rel (%p204) target = $region20
      $region19: #{tpu_custom_call.1} parent=5 // pred_region
        // Predicated region
        $region21: #{tpu_custom_call.1} parent=19 // pred_check
          %p207 = pneg %p76
        $region22: #{tpu_custom_call.1} parent=19 // pred_check_branch
          %209 = sbr.rel (%p207) target = $region24
        $region23: #{tpu_custom_call.1} parent=19 // pred_region
          %s210 = sand.u32 %s66, 1
          %s211 = scalar_lea.sflag [#allocation8], %s210
          %s212 = sand.u32 %s66, 1
          %s213 = smul.addr %s212, 64
          %s214 = scalar_lea.vmem [#allocation7], %s213
          %s215 = sadd.s32 %s47, %s48
          %s216 = sld [smem:[#allocation4 + %s215]]
          %218 = vsyncadd %s211, 0
          %s219 = smul.addr %s216, 16
          %s220 = smul.addr %s219, 4
          %s221 = scalar_lea.hbm %s3, %s220
          %s222 = sshll.u32 %s221, 4
          %s223 = int_to_ptr.hbm [resolvable:$true] %s222
          %s224 = sshll.u32 %s214, 4
          %s225 = int_to_ptr.vmem [resolvable:$true] %s224
          %230 = dma.hbm_to_vmem [thread:$0]  %s223, 1024, %s225, %s211, 64, 64, 4
        $region24: #{tpu_custom_call.1} parent=19 // pred_fallthru
          _
        // Predicated region
        $region25: #{tpu_custom_call.1} parent=19 // pred_check
          %p231 = pneg %p106
        $region26: #{tpu_custom_call.1} parent=19 // pred_check_branch
          %233 = sbr.rel (%p231) target = $region28
        $region27: #{tpu_custom_call.1} parent=19 // pred_region
          %s234 = sand.u32 %s40, 1
          %s235 = scalar_lea.sflag [#allocation11], %s234
          %s236 = sand.u32 %s96, 1
          %s237 = smul.addr %s236, 64
          %s238 = scalar_lea.vmem [#allocation10], %s237
          %s239 = sadd.s32 %s47, %s48
          %s240 = sld [smem:[#allocation5 + %s239]]
          %s241 = smul.u32 16, %s240
          %243 = vsyncadd %s235, 0
          %s244 = smul.addr %s241, 4
          %s245 = scalar_lea.hbm %s4, %s244
          %s246 = sshll.u32 %s245, 4
          %s247 = int_to_ptr.hbm [resolvable:$true] %s246
          %s248 = sshll.u32 %s238, 4
          %s249 = int_to_ptr.vmem [resolvable:$true] %s248
          %254 = dma.hbm_to_vmem [thread:$0]  %s247, 1024, %s249, %s235, 64, 64, 4
        $region28: #{tpu_custom_call.1} parent=19 // pred_fallthru
          _
        // Predicated region
        $region29: #{tpu_custom_call.1} parent=19 // pred_check
          %p255 = pneg %p132
        $region30: #{tpu_custom_call.1} parent=19 // pred_check_branch
          %257 = sbr.rel (%p255) target = $region32
        $region31: #{tpu_custom_call.1} parent=19 // pred_region
          %s258 = sand.u32 %s40, 1
          %s259 = scalar_lea.sflag [#allocation11], %s258
          %s260 = sand.u32 %s122, 1
          %s261 = smul.addr %s260, 4
          %s262 = scalar_lea.vmem [#allocation12], %s261
          %264 = vsyncadd %s259, 0
          %s265 = smul.addr %s47, 4
          %s266 = scalar_lea.hbm %s5, %s265
          %s268 = sshll.u32 %s266, 4
          %s269 = int_to_ptr.hbm [resolvable:$true] %s268
          %s270 = sshll.u32 %s262, 4
          %s271 = int_to_ptr.vmem [resolvable:$true] %s270
          %273 = dma.hbm_to_vmem [thread:$0]  %s269, 64, %s271, %s259
        $region32: #{tpu_custom_call.1} parent=19 // pred_fallthru
          _
      $region20: #{tpu_custom_call.1} parent=5 // pred_fallthru
        _
      %p274 = scmp.le.s32.totalorder 1, %s40
      %p275 = scmp.lt.s32.totalorder %s40, 3
      %p276 = pnand %p274, %p275
      %p277 = pneg %p276
      // Predicated region
      $region33: #{tpu_custom_call.1} parent=5 // pred_check
        _
      $region34: #{tpu_custom_call.1} parent=5 // pred_check_branch
        %279 = sbr.rel (%p276) target = $region36
      $region35: #{tpu_custom_call.1} parent=5 // pred_region
        %s280 = ssub.s32 %s40, 1
        %s281 = sand.u32 %s69, 1
        %s282 = scalar_lea.sflag [#allocation8], %s281
        %s283 = sand.u32 %s69, 1
        %s284 = smul.addr %s283, 64
        %s285 = scalar_lea.vmem [#allocation7], %s284
        // Predicated region
        $region37: #{tpu_custom_call.1} parent=35 // pred_check
          %p286 = pneg %p82
        $region38: #{tpu_custom_call.1} parent=35 // pred_check_branch
          %288 = sbr.rel (%p286) target = $region40
        $region39: #{tpu_custom_call.1} parent=35 // pred_region
          %290 = dma.done %s282, 1024
        $region40: #{tpu_custom_call.1} parent=35 // pred_fallthru
          _
        %s291 = sand.u32 %s45, 1
        %s292 = scalar_lea.sflag [#allocation11], %s291
        %s293 = sand.u32 %s99, 1
        %s294 = smul.addr %s293, 64
        %s295 = scalar_lea.vmem [#allocation10], %s294
        // Predicated region
        $region41: #{tpu_custom_call.1} parent=35 // pred_check
          %p296 = pneg %p112
        $region42: #{tpu_custom_call.1} parent=35 // pred_check_branch
          %298 = sbr.rel (%p296) target = $region44
        $region43: #{tpu_custom_call.1} parent=35 // pred_region
          %300 = dma.done %s292, 1024
        $region44: #{tpu_custom_call.1} parent=35 // pred_fallthru
          _
        %s301 = sand.u32 %s45, 1
        %s302 = scalar_lea.sflag [#allocation11], %s301
        %s303 = sand.u32 %s125, 1
        %s304 = smul.addr %s303, 4
        %s305 = scalar_lea.vmem [#allocation12], %s304
        // Predicated region
        $region45: #{tpu_custom_call.1} parent=35 // pred_check
          %p306 = pneg %p138
        $region46: #{tpu_custom_call.1} parent=35 // pred_check_branch
          %308 = sbr.rel (%p306) target = $region48
        $region47: #{tpu_custom_call.1} parent=35 // pred_region
          %310 = dma.done %s302, 64
        $region48: #{tpu_custom_call.1} parent=35 // pred_fallthru
          _
        %s311 = sand.u32 %s69, 1
        %s312 = scalar_lea.sflag [#allocation8], %s311
        %s313 = sand.u32 %s69, 1
        %s314 = smul.addr %s313, 64
        %s315 = scalar_lea.vmem [#allocation7], %s314
        %p316 = pneg %p82
        %p317 = pneg %p79
        %s318 = sand.u32 %s45, 1
        %s319 = scalar_lea.sflag [#allocation11], %s318
        %s320 = sand.u32 %s99, 1
        %s321 = smul.addr %s320, 64
        %s322 = scalar_lea.vmem [#allocation10], %s321
        %p323 = pneg %p112
        %p324 = pneg %p109
        %s325 = sand.u32 %s45, 1
        %s326 = scalar_lea.sflag [#allocation11], %s325
        %s327 = sand.u32 %s125, 1
        %s328 = smul.addr %s327, 4
        %s329 = scalar_lea.vmem [#allocation12], %s328
        %p330 = pneg %p138
        %p331 = pneg %p135
        %p332 = pneg %p159
        %p333 = pneg %p156
        %p334 = pneg %p185
        %p335 = pneg %p182
        %s336 = sand.u32 %s172, 1
        %s337 = scalar_lea.sflag [#allocation9], %s336
        %s338 = sand.u32 %s172, 1
        %s339 = smul.addr %s338, 8
        %s340 = scalar_lea.vmem [#allocation13], %s339
        %s341 = sadd.s32 %s49, %s50
        %s342 = sld [smem:[#allocation4 + %s341]]
        %s343 = sadd.s32 %s49, %s50
        %s344 = sld [smem:[#allocation5 + %s343]]
        %s345 = smul.u32 16, %s344
        %p346 = scmp.eq.s32.totalorder %s50, 0
        // Predicated region
        $region49: #{tpu_custom_call.1} parent=35 // pred_check
          %p347 = pneg %p346
        $region50: #{tpu_custom_call.1} parent=35 // pred_check_branch
          %349 = sbr.rel (%p347) target = $region52
        $region51: #{tpu_custom_call.1} parent=35 // pred_region
          %350 = vst [vmem:[#allocation2] sm:$0xff] 0.0
          %351 = vst [vmem:[#allocation2 + $0x8] sm:$0xff] 0.0
          %352 = vst [vmem:[#allocation2 + $0x10] sm:$0xff] 0.0
          %353 = vst [vmem:[#allocation2 + $0x18] sm:$0xff] 0.0
          %354 = vst [vmem:[#allocation2 + $0x20] sm:$0xff] 0.0
          %355 = vst [vmem:[#allocation2 + $0x28] sm:$0xff] 0.0
          %356 = vst [vmem:[#allocation2 + $0x30] sm:$0xff] 0.0
          %357 = vst [vmem:[#allocation2 + $0x38] sm:$0xff] 0.0
          %358 = vst [vmem:[#allocation2 + $0x40] sm:$0xff] 0.0
          %359 = vst [vmem:[#allocation2 + $0x48] sm:$0xff] 0.0
          %360 = vst [vmem:[#allocation2 + $0x50] sm:$0xff] 0.0
          %361 = vst [vmem:[#allocation2 + $0x58] sm:$0xff] 0.0
          %362 = vst [vmem:[#allocation2 + $0x60] sm:$0xff] 0.0
          %363 = vst [vmem:[#allocation2 + $0x68] sm:$0xff] 0.0
          %364 = vst [vmem:[#allocation2 + $0x70] sm:$0xff] 0.0
          %365 = vst [vmem:[#allocation2 + $0x78] sm:$0xff] 0.0
        $region52: #{tpu_custom_call.1} parent=35 // pred_fallthru
          _
        %s366 = sld [smem:[#allocation6 + %s49]]
        %p367 = scmp.lt.s32.totalorder %s50, %s366
        // Predicated region
        $region53: #{tpu_custom_call.1} parent=35 // pred_check
          %p368 = pneg %p367
        $region54: #{tpu_custom_call.1} parent=35 // pred_check_branch
          %370 = sbr.rel (%p368) target = $region56
        $region55: #{tpu_custom_call.1} parent=35 // pred_region
          %v371 = vld [vmem:[#allocation2] sm:$0xff]
          %v372 = vld [vmem:[#allocation2 + $0x8] sm:$0xff]
          %v373 = vld [vmem:[#allocation2 + $0x10] sm:$0xff]
          %v374 = vld [vmem:[#allocation2 + $0x18] sm:$0xff]
          %v375 = vld [vmem:[#allocation2 + $0x20] sm:$0xff]
          %v376 = vld [vmem:[#allocation2 + $0x28] sm:$0xff]
          %v377 = vld [vmem:[#allocation2 + $0x30] sm:$0xff]
          %v378 = vld [vmem:[#allocation2 + $0x38] sm:$0xff]
          %v379 = vld [vmem:[#allocation2 + $0x40] sm:$0xff]
          %v380 = vld [vmem:[#allocation2 + $0x48] sm:$0xff]
          %v381 = vld [vmem:[#allocation2 + $0x50] sm:$0xff]
          %v382 = vld [vmem:[#allocation2 + $0x58] sm:$0xff]
          %v383 = vld [vmem:[#allocation2 + $0x60] sm:$0xff]
          %v384 = vld [vmem:[#allocation2 + $0x68] sm:$0xff]
          %v385 = vld [vmem:[#allocation2 + $0x70] sm:$0xff]
          %v386 = vld [vmem:[#allocation2 + $0x78] sm:$0xff]
          %v387 = vld [vmem:[%s285] sm:$0xf]
          %v388 = vld [vmem:[%s285 + $0x4] sm:$0xf]
          %v389 = vld [vmem:[%s285 + $0x8] sm:$0xf]
          %v390 = vld [vmem:[%s285 + $0xc] sm:$0xf]
          %v391 = vld [vmem:[%s285 + $0x10] sm:$0xf]
          %v392 = vld [vmem:[%s285 + $0x14] sm:$0xf]
          %v393 = vld [vmem:[%s285 + $0x18] sm:$0xf]
          %v394 = vld [vmem:[%s285 + $0x1c] sm:$0xf]
          %v395 = vld [vmem:[%s285 + $0x20] sm:$0xf]
          %v396 = vld [vmem:[%s285 + $0x24] sm:$0xf]
          %v397 = vld [vmem:[%s285 + $0x28] sm:$0xf]
          %v398 = vld [vmem:[%s285 + $0x2c] sm:$0xf]
          %v399 = vld [vmem:[%s285 + $0x30] sm:$0xf]
          %v400 = vld [vmem:[%s285 + $0x34] sm:$0xf]
          %v401 = vld [vmem:[%s285 + $0x38] sm:$0xf]
          %v402 = vld [vmem:[%s285 + $0x3c] sm:$0xf]
          %v403 = vld [vmem:[%s295] sm:$0xf]
          %v404 = vld [vmem:[%s295 + $0x4] sm:$0xf]
          %v405 = vld [vmem:[%s295 + $0x8] sm:$0xf]
          %v406 = vld [vmem:[%s295 + $0xc] sm:$0xf]
          %v407 = vld [vmem:[%s295 + $0x10] sm:$0xf]
          %v408 = vld [vmem:[%s295 + $0x14] sm:$0xf]
          %v409 = vld [vmem:[%s295 + $0x18] sm:$0xf]
          %v410 = vld [vmem:[%s295 + $0x1c] sm:$0xf]
          %v411 = vld [vmem:[%s295 + $0x20] sm:$0xf]
          %v412 = vld [vmem:[%s295 + $0x24] sm:$0xf]
          %v413 = vld [vmem:[%s295 + $0x28] sm:$0xf]
          %v414 = vld [vmem:[%s295 + $0x2c] sm:$0xf]
          %v415 = vld [vmem:[%s295 + $0x30] sm:$0xf]
          %v416 = vld [vmem:[%s295 + $0x34] sm:$0xf]
          %v417 = vld [vmem:[%s295 + $0x38] sm:$0xf]
          %v418 = vld [vmem:[%s295 + $0x3c] sm:$0xf]
          %v435 = vunpack.c.l.b16 %v387
          %v436 = vunpack.c.l.b16 %v388
          %v437 = vunpack.c.l.b16 %v389
          %v438 = vunpack.c.l.b16 %v390
          %v439 = vunpack.c.l.b16 %v391
          %v440 = vunpack.c.l.b16 %v392
          %v441 = vunpack.c.l.b16 %v393
          %v442 = vunpack.c.l.b16 %v394
          %v443 = vunpack.c.l.b16 %v395
          %v444 = vunpack.c.l.b16 %v396
          %v445 = vunpack.c.l.b16 %v397
          %v446 = vunpack.c.l.b16 %v398
          %v447 = vunpack.c.l.b16 %v399
          %v448 = vunpack.c.l.b16 %v400
          %v449 = vunpack.c.l.b16 %v401
          %v450 = vunpack.c.l.b16 %v402
          %v451 = vpack.c.b16 %v436, %v435
          %v452 = vpack.c.b16 %v438, %v437
          %v453 = vpack.c.b16 %v440, %v439
          %v454 = vpack.c.b16 %v442, %v441
          %v455 = vpack.c.b16 %v444, %v443
          %v456 = vpack.c.b16 %v446, %v445
          %v457 = vpack.c.b16 %v448, %v447
          %v458 = vpack.c.b16 %v450, %v449
          %v483 = vunpack.c.l.b16 %v403
          %v484 = vunpack.c.l.b16 %v404
          %v485 = vunpack.c.l.b16 %v405
          %v486 = vunpack.c.l.b16 %v406
          %v487 = vunpack.c.l.b16 %v407
          %v488 = vunpack.c.l.b16 %v408
          %v489 = vunpack.c.l.b16 %v409
          %v490 = vunpack.c.l.b16 %v410
          %v491 = vunpack.c.l.b16 %v411
          %v492 = vunpack.c.l.b16 %v412
          %v493 = vunpack.c.l.b16 %v413
          %v494 = vunpack.c.l.b16 %v414
          %v495 = vunpack.c.l.b16 %v415
          %v496 = vunpack.c.l.b16 %v416
          %v497 = vunpack.c.l.b16 %v417
          %v498 = vunpack.c.l.b16 %v418
          %v499 = vpack.c.b16 %v484, %v483
          %v500 = vpack.c.b16 %v486, %v485
          %v501 = vpack.c.b16 %v488, %v487
          %v502 = vpack.c.b16 %v490, %v489
          %v503 = vpack.c.b16 %v492, %v491
          %v504 = vpack.c.b16 %v494, %v493
          %v505 = vpack.c.b16 %v496, %v495
          %v506 = vpack.c.b16 %v498, %v497
          %515 = vmatpush.bf16.msra.mxu0 %v506
          %516 = vmatpush.bf16.msra.mxu0 %v505
          %517 = vmatpush.bf16.msra.mxu0 %v504
          %518 = vmatpush.bf16.msra.mxu0 %v503
          %519 = vmatpush.bf16.msra.mxu0 %v502
          %520 = vmatpush.bf16.msra.mxu0 %v501
          %521 = vmatpush.bf16.msra.mxu0 %v500
          %522 = vmatpush.bf16.msra.mxu0 %v499
          %523 = vmatmul.bf16.gmra.mxu0 %v451
          %v524 = vpop.f32.mrf.mxu0
          %v525 = vadd.f32 0.0, %v524
          %v526 = vpop.f32.mrf.mxu0
          %v527 = vadd.f32 0.0, %v526
          %528 = vmatmul.bf16.gmra.mxu0 %v452
          %v529 = vpop.f32.mrf.mxu0
          %v530 = vadd.f32 0.0, %v529
          %v531 = vpop.f32.mrf.mxu0
          %v532 = vadd.f32 0.0, %v531
          %533 = vmatmul.bf16.gmra.mxu0 %v453
          %v534 = vpop.f32.mrf.mxu0
          %v535 = vadd.f32 0.0, %v534
          %v536 = vpop.f32.mrf.mxu0
          %v537 = vadd.f32 0.0, %v536
          %538 = vmatmul.bf16.gmra.mxu0 %v454
          %v539 = vpop.f32.mrf.mxu0
          %v540 = vadd.f32 0.0, %v539
          %v541 = vpop.f32.mrf.mxu0
          %v542 = vadd.f32 0.0, %v541
          %543 = vmatmul.bf16.gmra.mxu0 %v455
          %v544 = vpop.f32.mrf.mxu0
          %v545 = vadd.f32 0.0, %v544
          %v546 = vpop.f32.mrf.mxu0
          %v547 = vadd.f32 0.0, %v546
          %548 = vmatmul.bf16.gmra.mxu0 %v456
          %v549 = vpop.f32.mrf.mxu0
          %v550 = vadd.f32 0.0, %v549
          %v551 = vpop.f32.mrf.mxu0
          %v552 = vadd.f32 0.0, %v551
          %553 = vmatmul.bf16.gmra.mxu0 %v457
          %v554 = vpop.f32.mrf.mxu0
          %v555 = vadd.f32 0.0, %v554
          %v556 = vpop.f32.mrf.mxu0
          %v557 = vadd.f32 0.0, %v556
          %558 = vmatmul.bf16.gmra.mxu0 %v458
          %v559 = vpop.f32.mrf.mxu0
          %v560 = vadd.f32 0.0, %v559
          %v561 = vpop.f32.mrf.mxu0
          %v562 = vadd.f32 0.0, %v561
          %563 = vdwg.mxu0
          %v564 = vadd.f32 %v371, %v525
          %v565 = vadd.f32 %v372, %v527
          %v566 = vadd.f32 %v373, %v530
          %v567 = vadd.f32 %v374, %v532
          %v568 = vadd.f32 %v375, %v535
          %v569 = vadd.f32 %v376, %v537
          %v570 = vadd.f32 %v377, %v540
          %v571 = vadd.f32 %v378, %v542
          %v572 = vadd.f32 %v379, %v545
          %v573 = vadd.f32 %v380, %v547
          %v574 = vadd.f32 %v381, %v550
          %v575 = vadd.f32 %v382, %v552
          %v576 = vadd.f32 %v383, %v555
          %v577 = vadd.f32 %v384, %v557
          %v578 = vadd.f32 %v385, %v560
          %v579 = vadd.f32 %v386, %v562
          %580 = vst [vmem:[#allocation2] sm:$0xff] %v564
          %581 = vst [vmem:[#allocation2 + $0x8] sm:$0xff] %v565
          %582 = vst [vmem:[#allocation2 + $0x10] sm:$0xff] %v566
          %583 = vst [vmem:[#allocation2 + $0x18] sm:$0xff] %v567
          %584 = vst [vmem:[#allocation2 + $0x20] sm:$0xff] %v568
          %585 = vst [vmem:[#allocation2 + $0x28] sm:$0xff] %v569
          %586 = vst [vmem:[#allocation2 + $0x30] sm:$0xff] %v570
          %587 = vst [vmem:[#allocation2 + $0x38] sm:$0xff] %v571
          %588 = vst [vmem:[#allocation2 + $0x40] sm:$0xff] %v572
          %589 = vst [vmem:[#allocation2 + $0x48] sm:$0xff] %v573
          %590 = vst [vmem:[#allocation2 + $0x50] sm:$0xff] %v574
          %591 = vst [vmem:[#allocation2 + $0x58] sm:$0xff] %v575
          %592 = vst [vmem:[#allocation2 + $0x60] sm:$0xff] %v576
          %593 = vst [vmem:[#allocation2 + $0x68] sm:$0xff] %v577
          %594 = vst [vmem:[#allocation2 + $0x70] sm:$0xff] %v578
          %595 = vst [vmem:[#allocation2 + $0x78] sm:$0xff] %v579
        $region56: #{tpu_custom_call.1} parent=35 // pred_fallthru
          _
        // Predicated region
        $region57: #{tpu_custom_call.1} parent=35 // pred_check
          %p596 = pneg %p346
        $region58: #{tpu_custom_call.1} parent=35 // pred_check_branch
          %598 = sbr.rel (%p596) target = $region60
        $region59: #{tpu_custom_call.1} parent=35 // pred_region
          %v599 = vld [vmem:[#allocation2] sm:$0xff]
          %v600 = vld [vmem:[#allocation2 + $0x8] sm:$0xff]
          %v601 = vld [vmem:[#allocation2 + $0x10] sm:$0xff]
          %v602 = vld [vmem:[#allocation2 + $0x18] sm:$0xff]
          %v603 = vld [vmem:[#allocation2 + $0x20] sm:$0xff]
          %v604 = vld [vmem:[#allocation2 + $0x28] sm:$0xff]
          %v605 = vld [vmem:[#allocation2 + $0x30] sm:$0xff]
          %v606 = vld [vmem:[#allocation2 + $0x38] sm:$0xff]
          %v607 = vld [vmem:[#allocation2 + $0x40] sm:$0xff]
          %v608 = vld [vmem:[#allocation2 + $0x48] sm:$0xff]
          %v609 = vld [vmem:[#allocation2 + $0x50] sm:$0xff]
          %v610 = vld [vmem:[#allocation2 + $0x58] sm:$0xff]
          %v611 = vld [vmem:[#allocation2 + $0x60] sm:$0xff]
          %v612 = vld [vmem:[#allocation2 + $0x68] sm:$0xff]
          %v613 = vld [vmem:[#allocation2 + $0x70] sm:$0xff]
          %v614 = vld [vmem:[#allocation2 + $0x78] sm:$0xff]
          %v615 = vld [vmem:[%s6] sm:$0x1]
          %v617 = vperm.slane %v615, 0
          %v619 = vadd.f32 %v599, %v617
          %v620 = vadd.f32 %v600, %v617
          %v621 = vadd.f32 %v601, %v617
          %v622 = vadd.f32 %v602, %v617
          %v623 = vadd.f32 %v603, %v617
          %v624 = vadd.f32 %v604, %v617
          %v625 = vadd.f32 %v605, %v617
          %v626 = vadd.f32 %v606, %v617
          %v627 = vadd.f32 %v607, %v617
          %v628 = vadd.f32 %v608, %v617
          %v629 = vadd.f32 %v609, %v617
          %v630 = vadd.f32 %v610, %v617
          %v631 = vadd.f32 %v611, %v617
          %v632 = vadd.f32 %v612, %v617
          %v633 = vadd.f32 %v613, %v617
          %v634 = vadd.f32 %v614, %v617
          %v635 = vmax.f32 %v619, 0.0
          %v636 = vmax.f32 %v620, 0.0
          %v637 = vmax.f32 %v621, 0.0
          %v638 = vmax.f32 %v622, 0.0
          %v639 = vmax.f32 %v623, 0.0
          %v640 = vmax.f32 %v624, 0.0
          %v641 = vmax.f32 %v625, 0.0
          %v642 = vmax.f32 %v626, 0.0
          %v643 = vmax.f32 %v627, 0.0
          %v644 = vmax.f32 %v628, 0.0
          %v645 = vmax.f32 %v629, 0.0
          %v646 = vmax.f32 %v630, 0.0
          %v647 = vmax.f32 %v631, 0.0
          %v648 = vmax.f32 %v632, 0.0
          %v649 = vmax.f32 %v633, 0.0
          %v650 = vmax.f32 %v634, 0.0
          %v651 = vld [vmem:[%s305] sm:$0xf]
          %v652 = vpack.c.bf16 %v636, %v635
          %v653 = vpack.c.bf16 %v638, %v637
          %v654 = vpack.c.bf16 %v640, %v639
          %v655 = vpack.c.bf16 %v642, %v641
          %v656 = vpack.c.bf16 %v644, %v643
          %v657 = vpack.c.bf16 %v646, %v645
          %v658 = vpack.c.bf16 %v648, %v647
          %v659 = vpack.c.bf16 %v650, %v649
          %660 = vmatpush.bf16.msra.mxu0 %v659
          %661 = vmatpush.bf16.msra.mxu0 %v658
          %662 = vmatpush.bf16.msra.mxu0 %v657
          %663 = vmatpush.bf16.msra.mxu0 %v656
          %664 = vmatpush.bf16.msra.mxu0 %v655
          %665 = vmatpush.bf16.msra.mxu0 %v654
          %666 = vmatpush.bf16.msra.mxu0 %v653
          %667 = vmatpush.bf16.msra.mxu0 %v652
          %668 = vmatmul.bf16.gmra.mxu0 %v651
          %v669 = vpop.f32.mrf.mxu0
          %v670 = vadd.f32 0.0, %v669
          %v671 = vpop.f32.mrf.mxu0
          %672 = vdwg.mxu0
          %673 = vst [vmem:[%s340] sm:$0xff] %v670
        $region60: #{tpu_custom_call.1} parent=35 // pred_fallthru
          _
        %s674 = sand.u32 %s172, 1
        %s675 = scalar_lea.sflag [#allocation9], %s674
        %s676 = sand.u32 %s172, 1
        %s677 = smul.addr %s676, 8
        %s678 = scalar_lea.vmem [#allocation13], %s677
        // Predicated region
        $region61: #{tpu_custom_call.1} parent=35 // pred_check
          %p679 = pneg %p182
        $region62: #{tpu_custom_call.1} parent=35 // pred_check_branch
          %681 = sbr.rel (%p679) target = $region64
        $region63: #{tpu_custom_call.1} parent=35 // pred_region
          %683 = vsyncadd %s675, 0
          %s684 = smul.addr %s49, 8
          %s685 = scalar_lea.hbm %s7, %s684
          %s687 = sshll.u32 %s678, 4
          %s688 = int_to_ptr.vmem [resolvable:$true] %s687
          %s689 = sshll.u32 %s685, 4
          %s690 = int_to_ptr.hbm [resolvable:$true] %s689
          %692 = dma.vmem_to_hbm [thread:$0]  %s688, 128, %s690, %s675
        $region64: #{tpu_custom_call.1} parent=35 // pred_fallthru
          _
      $region36: #{tpu_custom_call.1} parent=5 // pred_fallthru
        _
      %p693 = scmp.le.s32.totalorder 2, %s40
      // Predicated region
      $region65: #{tpu_custom_call.1} parent=5 // pred_check
        %p694 = pneg %p693
      $region66: #{tpu_custom_call.1} parent=5 // pred_check_branch
        %696 = sbr.rel (%p694) target = $region68
      $region67: #{tpu_custom_call.1} parent=5 // pred_region
        %s697 = ssub.s32 %s40, 2
        // Predicated region
        $region69: #{tpu_custom_call.1} parent=67 // pred_check
          %p698 = pneg %p188
        $region70: #{tpu_custom_call.1} parent=67 // pred_check_branch
          %700 = sbr.rel (%p698) target = $region72
        $region71: #{tpu_custom_call.1} parent=67 // pred_region
          %s701 = sand.u32 %s173, 1
          %s702 = scalar_lea.sflag [#allocation9], %s701
          %s703 = sand.u32 %s173, 1
          %s704 = smul.addr %s703, 8
          %s705 = scalar_lea.vmem [#allocation13], %s704
          %707 = dma.done %s702, 128
        $region72: #{tpu_custom_call.1} parent=67 // pred_fallthru
          _
      $region68: #{tpu_custom_call.1} parent=5 // pred_fallthru
        _
    $region6: #{tpu_custom_call.1} parent=1 // loop_footer
      %s44 = sadd.s32 1, %s40
    $region7: #{tpu_custom_call.1} parent=1 // loop_footer_branch
      %39 = sbr.rel target = $region3
    $region8: #{tpu_custom_call.1} parent=1 // loop_exit
      _
    %708 = vsyncpa [#allocation8], 1
    %s709 = scalar_lea.sflag [#allocation8], 1
    %710 = vsyncpa %s709, 1
    %711 = vsyncpa [#allocation11], 1
    %s712 = scalar_lea.sflag [#allocation11], 1
    %713 = vsyncpa %s712, 1
    %714 = vsyncpa [#allocation9], 1
    %s715 = scalar_lea.sflag [#allocation9], 1
    %716 = vsyncpa %s715, 1

</llo_original>
